<compile_context>
chip_gen: v5e
topology: v5e:2x2
jax: 0.10.0
libtpu: 0.0.40
codegen_flags: <defaults>
</compile_context>

<pallas_src>
import functools

import jax
import jax.numpy as jnp
from jax import lax
from jax.experimental import pallas as pl
from jax.experimental.pallas import tpu as pltpu


def _subtraction_gaussian_kernel(q_ref, k_ref, qsq_ref, ksq_ref, o_ref, *,
                                 apply_exp, dot_precision):
    # q_ref: (TM, C), k_ref: (C, TN), qsq_ref: (TM, 1), ksq_ref: (1, TN),
    # o_ref: (TM, TN) — batch/head dims squeezed away by the BlockSpecs.
    q = q_ref[...]                       # input dtype (bf16 or f32)
    k = k_ref[...]
    # Fold the -2 into the small (TM, C) operand (exact power-of-two scale);
    # MXU accumulates in f32.
    neg2_qk = jnp.dot(q * (-2), k,
                      preferred_element_type=jnp.float32,
                      precision=dot_precision)                 # (TM, TN)
    d = qsq_ref[...] + ksq_ref[...] + neg2_qk
    # Exact squared distance is >= 0; clamp cancellation noise before use.
    d = jnp.maximum(d, 0.0)
    if apply_exp:
        # Fused Gaussian: uses the otherwise-idle EUP slot, hidden under the
        # output writeback DMA.
        d = jnp.exp(-0.5 * d)
    o_ref[...] = d.astype(o_ref.dtype)


def subtraction_gaussian(query, key, *, tm=512, tn=2048,
                         apply_exp=False, out_dtype=None):
    """Pallas equivalent of SOFT's subtraction_gaussian_kernel forward.

    query: (B, H, Lq, C), key: (B, H, C, Lk) -> (B, H, Lq, Lk).

    tm / tn are Lq / Lk tile sizes (tm multiple of 8, tn multiple of 128); large
    defaults keep the write-bound kernel off the per-step-overhead floor. Small
    dims fall back to a single full-extent block.  apply_exp=True additionally
    fuses the downstream exp(-d/2) of the Gaussian.  out_dtype (e.g. bf16) can
    halve the dominant output HBM traffic; default preserves query.dtype.
    """
    assert query.ndim == 4 and key.ndim == 4 and query.shape[-1] == key.shape[-2]
    B, H, Lq, C = query.shape
    Lk = key.shape[-1]
    out_dtype = query.dtype if out_dtype is None else jnp.dtype(out_dtype)

    assert tm % 8 == 0 and tn % 128 == 0
    # Small dims: a single full-extent block (always a legal block shape).
    tm = Lq if Lq <= tm else tm
    tn = Lk if Lk <= tn else tn

    # Precompute the squared norms once (tiny tensors relative to the (Lq, Lk)
    # output); avoids re-reducing over C inside every (i, j) tile and keeps the
    # grid fully parallel (no scratch carry needed for Q-side hoisting).
    q32 = query.astype(jnp.float32)
    k32 = key.astype(jnp.float32)
    q_sq = jnp.sum(q32 * q32, axis=-1, keepdims=True)   # (B, H, Lq, 1)
    k_sq = jnp.sum(k32 * k32, axis=-2, keepdims=True)   # (B, H, 1, Lk)

    # f32 inputs: force the real-f32 MXU path (multi-pass) so the
    # ||q||^2 + ||k||^2 - 2 q.k expansion doesn't lose bits to bf16 lowering.
    dot_precision = (lax.Precision.HIGHEST
                     if query.dtype == jnp.float32 else lax.Precision.DEFAULT)

    grid = (B, H, pl.cdiv(Lq, tm), pl.cdiv(Lk, tn))

    in_specs = [
        pl.BlockSpec((pl.Squeezed(), pl.Squeezed(), tm, C),
                     lambda b, h, i, j: (b, h, i, 0)),
        pl.BlockSpec((pl.Squeezed(), pl.Squeezed(), C, tn),
                     lambda b, h, i, j: (b, h, 0, j)),
        pl.BlockSpec((pl.Squeezed(), pl.Squeezed(), tm, 1),
                     lambda b, h, i, j: (b, h, i, 0)),
        pl.BlockSpec((pl.Squeezed(), pl.Squeezed(), 1, tn),
                     lambda b, h, i, j: (b, h, 0, j)),
    ]
    out_spec = pl.BlockSpec((pl.Squeezed(), pl.Squeezed(), tm, tn),
                            lambda b, h, i, j: (b, h, i, j))

    # VMEM budget: double-buffered I/O tiles + the f32 (tm, tn) matmul
    # intermediate, plus slack for Mosaic internal scratch.  Stays well under
    # v7x's 64 MiB per-TC VMEM at the default tiles (~21 MiB).
    in_item = jnp.dtype(query.dtype).itemsize
    out_item = jnp.dtype(out_dtype).itemsize
    needed = (2 * (tm * C * in_item + C * tn * in_item
                   + tm * 4 + tn * 4 + tm * tn * out_item)
              + tm * tn * 4)
    vmem_limit = int(max(needed + (8 << 20), 24 << 20))

    kernel = functools.partial(_subtraction_gaussian_kernel,
                               apply_exp=apply_exp,
                               dot_precision=dot_precision)

    return pl.pallas_call(
        kernel,
        out_shape=jax.ShapeDtypeStruct((B, H, Lq, Lk), out_dtype),
        grid_spec=pltpu.PrefetchScalarGridSpec(
            num_scalar_prefetch=0,
            grid=grid,
            in_specs=in_specs,
            out_specs=out_spec,
        ),
        compiler_params=pltpu.CompilerParams(
            # Every (b, h, i, j) output tile is independent (no accumulator),
            # so all axes can be split across TensorCores (v7x megacore).
            dimension_semantics=("parallel", "parallel", "parallel", "parallel"),
            vmem_limit_bytes=vmem_limit,
        ),
    )(query, key, q_sq, k_sq)


def _reference(query, key):
    # Pure-JAX reference: direct broadcasted squared-difference reduction.
    q = query.astype(jnp.float32)[..., :, None, :]                       # (B,H,Lq,1,C)
    k = jnp.swapaxes(key.astype(jnp.float32), -1, -2)[..., None, :, :]   # (B,H,1,Lk,C)
    return jnp.sum((q - k) ** 2, axis=-1)


if __name__ == "__main__":
    key0 = jax.random.PRNGKey(0)

    # Test 1: small shapes consistent with the module (single full-extent block).
    B, H, Lq, C, Lk = 2, 4, 16, 32, 16
    kq, kk, key0 = jax.random.split(key0, 3)
    query = jax.random.normal(kq, (B, H, Lq, C), dtype=jnp.float32)
    keyt = jax.random.normal(kk, (B, H, C, Lk), dtype=jnp.float32)

    out = jax.block_until_ready(subtraction_gaussian(query, keyt))
    ref = _reference(query, keyt)
    assert out.shape == (B, H, Lq, Lk)
    assert jnp.allclose(out, ref.astype(out.dtype), atol=1e-3, rtol=1e-4), \
        "mismatch vs reference (small)"

    # Test 1b: fused exp(-d/2) path (optional Gaussian fusion).
    out_exp = jax.block_until_ready(subtraction_gaussian(query, keyt, apply_exp=True))
    ref_exp = jnp.exp(-0.5 * ref)
    assert jnp.allclose(out_exp, ref_exp.astype(out_exp.dtype), atol=1e-3, rtol=1e-4), \
        "mismatch vs reference (fused exp)"

    # Test 2: exercises the tiled (Lq, Lk) grid path with lane-dense 128-wide tiles.
    B2, H2, Lq2, C2, Lk2 = 1, 2, 384, 32, 256
    kq2, kk2 = jax.random.split(key0)
    query2 = jax.random.normal(kq2, (B2, H2, Lq2, C2), dtype=jnp.float32)
    keyt2 = jax.random.normal(kk2, (B2, H2, C2, Lk2), dtype=jnp.float32)

    out2 = jax.block_until_ready(subtraction_gaussian(query2, keyt2, tm=128, tn=128))
    ref2 = _reference(query2, keyt2)
    assert out2.shape == (B2, H2, Lq2, Lk2)
    assert jnp.allclose(out2, ref2.astype(out2.dtype), atol=1e-3, rtol=1e-4), \
        "mismatch vs reference (tiled)"

    # TODO(synk): backward pass (GaussianSubtraction_backward_*) not implemented here;
    # only the forward op of the module is translated.
    print("KERNEL_OK")
</pallas_src>

<mosaic_0001>
module attributes {stable_mosaic.version = 11 : i64} {
  func.func @_subtraction_gaussian_kernel(%arg0: i32, %arg1: i32, %arg2: i32, %arg3: i32, %arg4: memref<1x1x16x32xf32, #tpu.memory_space<vmem>>, %arg5: memref<1x1x32x16xf32, #tpu.memory_space<vmem>>, %arg6: memref<1x1x16x1xf32, #tpu.memory_space<vmem>>, %arg7: memref<1x1x1x16xf32, #tpu.memory_space<vmem>>, %arg8: memref<1x1x16x16xf32, #tpu.memory_space<vmem>>) attributes {dimension_semantics = [#tpu.dimension_semantics<parallel>, #tpu.dimension_semantics<parallel>, #tpu.dimension_semantics<parallel>, #tpu.dimension_semantics<parallel>], iteration_bounds = array<i64: 2, 4, 1, 1>, scalar_prefetch = 0 : i64, scratch_operands = 0 : i64, tpu.core_type = #tpu.core_type<tc>, window_params = [{transform_indices = @transform_0, window_bounds = array<i64: 1, 1, 16, 32>}, {transform_indices = @transform_1, window_bounds = array<i64: 1, 1, 32, 16>}, {transform_indices = @transform_2, window_bounds = array<i64: 1, 1, 16, 1>}, {transform_indices = @transform_3, window_bounds = array<i64: 1, 1, 1, 16>}, {transform_indices = @transform_4, window_bounds = array<i64: 1, 1, 16, 16>}]} {
    %c0 = arith.constant 0 : index
    %c0_0 = arith.constant 0 : index
    %c0_1 = arith.constant 0 : index
    %c0_2 = arith.constant 0 : index
    %0 = vector.load %arg4[%c0, %c0_0, %c0_1, %c0_2] : memref<1x1x16x32xf32, #tpu.memory_space<vmem>>, vector<1x1x16x32xf32>
    %1 = vector.shape_cast %0 : vector<1x1x16x32xf32> to vector<16x32xf32>
    %c0_3 = arith.constant 0 : index
    %c0_4 = arith.constant 0 : index
    %c0_5 = arith.constant 0 : index
    %c0_6 = arith.constant 0 : index
    %2 = vector.load %arg5[%c0_3, %c0_4, %c0_5, %c0_6] : memref<1x1x32x16xf32, #tpu.memory_space<vmem>>, vector<1x1x32x16xf32>
    %3 = vector.shape_cast %2 : vector<1x1x32x16xf32> to vector<32x16xf32>
    %cst = arith.constant -2.000000e+00 : f32
    %4 = vector.broadcast %cst : f32 to vector<16x32xf32>
    %5 = arith.mulf %1, %4 : vector<16x32xf32>
    %cst_7 = arith.constant dense<0.000000e+00> : vector<16x16xf32>
    %6 = tpu.matmul %5, %3, %cst_7 {dimension_numbers = #tpu.dot_dimension_numbers<[1], [0], [0], [1], [0, 0, 1, 1], [], []>, precision = #tpu.contract_precision<fp32>} : vector<16x32xf32>, vector<32x16xf32>, vector<16x16xf32> -> vector<16x16xf32>
    %c0_8 = arith.constant 0 : index
    %c0_9 = arith.constant 0 : index
    %c0_10 = arith.constant 0 : index
    %c0_11 = arith.constant 0 : index
    %7 = vector.load %arg6[%c0_8, %c0_9, %c0_10, %c0_11] : memref<1x1x16x1xf32, #tpu.memory_space<vmem>>, vector<1x1x16x1xf32>
    %8 = vector.shape_cast %7 : vector<1x1x16x1xf32> to vector<16x1xf32>
    %c0_12 = arith.constant 0 : index
    %c0_13 = arith.constant 0 : index
    %c0_14 = arith.constant 0 : index
    %c0_15 = arith.constant 0 : index
    %9 = vector.load %arg7[%c0_12, %c0_13, %c0_14, %c0_15] : memref<1x1x1x16xf32, #tpu.memory_space<vmem>>, vector<1x1x1x16xf32>
    %10 = vector.shape_cast %9 : vector<1x1x1x16xf32> to vector<1x16xf32>
    %11 = vector.broadcast %8 : vector<16x1xf32> to vector<16x16xf32>
    %12 = vector.broadcast %10 : vector<1x16xf32> to vector<16x16xf32>
    %13 = arith.addf %11, %12 : vector<16x16xf32>
    %14 = arith.addf %13, %6 : vector<16x16xf32>
    %cst_16 = arith.constant 0.000000e+00 : f32
    %15 = vector.broadcast %cst_16 : f32 to vector<16x16xf32>
    %16 = arith.maximumf %14, %15 : vector<16x16xf32>
    %c0_17 = arith.constant 0 : index
    %c0_18 = arith.constant 0 : index
    %c0_19 = arith.constant 0 : index
    %c0_20 = arith.constant 0 : index
    %17 = vector.load %arg8[%c0_17, %c0_18, %c0_19, %c0_20] : memref<1x1x16x16xf32, #tpu.memory_space<vmem>>, vector<1x1x16x16xf32>
    %18 = vector.shape_cast %17 : vector<1x1x16x16xf32> to vector<16x16xf32>
    %19 = vector.shape_cast %16 : vector<16x16xf32> to vector<1x1x16x16xf32>
    tpu.vector_store %arg8[%c0_17, %c0_18, %c0_19, %c0_20], %19 {strides = array<i32>} : memref<1x1x16x16xf32, #tpu.memory_space<vmem>>, vector<1x1x16x16xf32>,
    return
  }
  func.func @transform_0(%arg0: i32, %arg1: i32, %arg2: i32, %arg3: i32) -> (i32, i32, i32, i32) {
    %c0_i32 = arith.constant 0 : i32
    %c0_i32_0 = arith.constant 0 : i32
    return %arg0, %arg1, %arg2, %c0_i32 : i32, i32, i32, i32
  }
  func.func @transform_1(%arg0: i32, %arg1: i32, %arg2: i32, %arg3: i32) -> (i32, i32, i32, i32) {
    %c0_i32 = arith.constant 0 : i32
    %c0_i32_0 = arith.constant 0 : i32
    return %arg0, %arg1, %c0_i32, %arg3 : i32, i32, i32, i32
  }
  func.func @transform_2(%arg0: i32, %arg1: i32, %arg2: i32, %arg3: i32) -> (i32, i32, i32, i32) {
    %c0_i32 = arith.constant 0 : i32
    %c0_i32_0 = arith.constant 0 : i32
    return %arg0, %arg1, %arg2, %c0_i32 : i32, i32, i32, i32
  }
  func.func @transform_3(%arg0: i32, %arg1: i32, %arg2: i32, %arg3: i32) -> (i32, i32, i32, i32) {
    %c0_i32 = arith.constant 0 : i32
    %c0_i32_0 = arith.constant 0 : i32
    return %arg0, %arg1, %c0_i32, %arg3 : i32, i32, i32, i32
  }
  func.func @transform_4(%arg0: i32, %arg1: i32, %arg2: i32, %arg3: i32) -> (i32, i32, i32, i32) {
    %c0_i32 = arith.constant 0 : i32
    return %arg0, %arg1, %arg2, %arg3 : i32, i32, i32, i32
  }
}

</mosaic_0001>

<llo_original>
// kernel: tpu_custom_call.1
$region0: #{tpu_custom_call.1}
  #allocation0 [shape = 'u32[]', space=smem, size = 0x4, offset = 0x4, fixed_abs, tag = 'smem constant byte address 0x4 - core index']
  #allocation1 [shape = 'u32[72,128]{1,0:T(1,128)}', space=vmem, size = 0x9000, scoped, tag = 'internal scratch']
  %s0 = inlined_call_operand.vmem [shape: f32[2,4,16,32], index: 0, kind: input, shape index: {}]
  %s1 = inlined_call_operand.vmem [shape: f32[2,4,32,16], index: 1, kind: input, shape index: {}]
  %s2 = inlined_call_operand.vmem [shape: f32[2,4,16,1], index: 2, kind: input, shape index: {}]
  %s3 = inlined_call_operand.vmem [shape: f32[2,4,1,16], index: 3, kind: input, shape index: {}]
  %s4 = inlined_call_operand.hbm [shape: f32[2,4,16,16], index: 4, kind: output, shape index: {}]
  %s5 = sld [smem:[#allocation0]]
  $region49: #{tpu_custom_call.1} parent=0
    _
  %s7 = ssub.s32 1, %s5
  %s8 = scalar_select 0, %s7, %s5
  $region1: #{tpu_custom_call.1} parent=0
    #allocation2 [shape = 'u8[16384]{0}', space=vmem, size = 0x4000, scoped, tag = 'output window, operand 0']
    #allocation3 [shape = 's32[2]{0}', space=sflag, size = 0x8, scoped, tag = 'scoped memory for tpu_custom_call.1']
    %9 = vsyncpa [#allocation3], 0
    %s10 = scalar_lea.sflag [#allocation3], 1
    %11 = vsyncpa %s10, 0
    loop: start=0, step=1, limit=10
    $region2: #{tpu_custom_call.1} parent=1 // loop_pre_header
      _
    $region3: #{tpu_custom_call.1} parent=1 // loop_header
      %s13 = sphi 0, %s17
      %p14 = scmp.ge.s32.totalorder %s13, 10
      %s20 = sphi 0, %s46
      %s21 = sphi 0, %s42
      %s22 = sphi 0, %s38
      %s23 = sphi 0, %s34
      %s24 = sphi 0, %s20
      %s25 = sphi 0, %s21
      %s26 = sphi 0, %s22
      %s27 = sphi 0, %s23
      %s28 = sphi 0, %s24
      %s29 = sphi 0, %s25
      %s30 = sphi 0, %s26
      %s31 = sphi 0, %s27
      %s53 = sphi 0, %s55
      %s56 = sphi 0, %s53
      %s57 = sphi 0, %s56
      %s73 = sphi 0, %s57
      %s83 = sphi 0, %s85
      %s86 = sphi 0, %s83
      %s87 = sphi 0, %s86
      %s103 = sphi 0, %s87
      %s113 = sphi 0, %s115
      %s116 = sphi 0, %s113
      %s117 = sphi 0, %s116
      %s133 = sphi 0, %s117
      %s143 = sphi 0, %s145
      %s146 = sphi 0, %s143
      %s147 = sphi 0, %s146
      %s163 = sphi 0, %s147
      %s175 = sphi 0, %s177
      %s178 = sphi 0, %s175
      %s179 = sphi 0, %s178
      %s195 = sphi 0, %s179
    $region4: #{tpu_custom_call.1} parent=1 // loop_header_branch
      %16 = sbr.rel (%p14) target = $region8
    $region5: #{tpu_custom_call.1} parent=1 // loop_body
      %s18 = ssub.s32 %s13, 1
      %s19 = ssub.s32 %s13, 2
      %s32 = sadd.s32 1, %s23
      %p33 = scmp.ge.s32.totalorder %s32, 1
      %s34 = scalar_select %p33, 0, %s32
      %s35 = sadd.s32 1, %s22
      %s36 = scalar_select %p33, %s35, %s22
      %p37 = scmp.ge.s32.totalorder %s36, 1
      %s38 = scalar_select %p37, 0, %s36
      %s39 = sadd.s32 1, %s21
      %s40 = scalar_select %p37, %s39, %s21
      %p41 = scmp.ge.s32.totalorder %s40, 4
      %s42 = scalar_select %p41, 0, %s40
      %s43 = sadd.s32 1, %s20
      %s44 = scalar_select %p41, %s43, %s20
      %p45 = scmp.ge.s32.totalorder %s44, 2
      %s46 = scalar_select %p45, 0, %s44
      %s47 = ssub.s32 %s20, %s46
      %s48 = ssub.s32 %s21, %s42
      %s49 = sor.u32 %s47, %s48
      %s50 = ssub.s32 %s22, %s38
      %s51 = sor.u32 %s49, %s50
      %p52 = scmp.eq.s32.totalorder %s51, 0
      %s54 = sadd.s32 %s53, 1
      %s55 = scalar_select %p52, %s53, %s54
      %p58 = pneg %p52
      %p59 = scmp.eq.s32.totalorder %s13, 7
      %p60 = por %p58, %p59
      %p61 = scmp.ne.s32.totalorder %s53, %s56
      %p62 = scmp.eq.s32.totalorder %s13, 0
      %p63 = por %p61, %p62
      %p64 = scmp.ne.s32.totalorder %s53, %s56
      %p65 = scmp.eq.s32.totalorder %s18, 7
      %p66 = por %p64, %p65
      %p67 = scmp.ne.s32.totalorder %s56, %s57
      %p68 = scmp.eq.s32.totalorder %s18, 0
      %p69 = por %p67, %p68
      %p70 = scmp.ne.s32.totalorder %s56, %s57
      %p71 = scmp.eq.s32.totalorder %s19, 7
      %p72 = por %p70, %p71
      %p74 = scmp.ne.s32.totalorder %s57, %s73
      %p75 = scmp.eq.s32.totalorder %s19, 0
      %p76 = por %p74, %p75
      %s77 = ssub.s32 %s20, %s46
      %s78 = ssub.s32 %s21, %s42
      %s79 = sor.u32 %s77, %s78
      %s80 = ssub.s32 %s23, %s34
      %s81 = sor.u32 %s79, %s80
      %p82 = scmp.eq.s32.totalorder %s81, 0
      %s84 = sadd.s32 %s83, 1
      %s85 = scalar_select %p82, %s83, %s84
      %p88 = pneg %p82
      %p89 = scmp.eq.s32.totalorder %s13, 7
      %p90 = por %p88, %p89
      %p91 = scmp.ne.s32.totalorder %s83, %s86
      %p92 = scmp.eq.s32.totalorder %s13, 0
      %p93 = por %p91, %p92
      %p94 = scmp.ne.s32.totalorder %s83, %s86
      %p95 = scmp.eq.s32.totalorder %s18, 7
      %p96 = por %p94, %p95
      %p97 = scmp.ne.s32.totalorder %s86, %s87
      %p98 = scmp.eq.s32.totalorder %s18, 0
      %p99 = por %p97, %p98
      %p100 = scmp.ne.s32.totalorder %s86, %s87
      %p101 = scmp.eq.s32.totalorder %s19, 7
      %p102 = por %p100, %p101
      %p104 = scmp.ne.s32.totalorder %s87, %s103
      %p105 = scmp.eq.s32.totalorder %s19, 0
      %p106 = por %p104, %p105
      %s107 = ssub.s32 %s20, %s46
      %s108 = ssub.s32 %s21, %s42
      %s109 = sor.u32 %s107, %s108
      %s110 = ssub.s32 %s22, %s38
      %s111 = sor.u32 %s109, %s110
      %p112 = scmp.eq.s32.totalorder %s111, 0
      %s114 = sadd.s32 %s113, 1
      %s115 = scalar_select %p112, %s113, %s114
      %p118 = pneg %p112
      %p119 = scmp.eq.s32.totalorder %s13, 7
      %p120 = por %p118, %p119
      %p121 = scmp.ne.s32.totalorder %s113, %s116
      %p122 = scmp.eq.s32.totalorder %s13, 0
      %p123 = por %p121, %p122
      %p124 = scmp.ne.s32.totalorder %s113, %s116
      %p125 = scmp.eq.s32.totalorder %s18, 7
      %p126 = por %p124, %p125
      %p127 = scmp.ne.s32.totalorder %s116, %s117
      %p128 = scmp.eq.s32.totalorder %s18, 0
      %p129 = por %p127, %p128
      %p130 = scmp.ne.s32.totalorder %s116, %s117
      %p131 = scmp.eq.s32.totalorder %s19, 7
      %p132 = por %p130, %p131
      %p134 = scmp.ne.s32.totalorder %s117, %s133
      %p135 = scmp.eq.s32.totalorder %s19, 0
      %p136 = por %p134, %p135
      %s137 = ssub.s32 %s20, %s46
      %s138 = ssub.s32 %s21, %s42
      %s139 = sor.u32 %s137, %s138
      %s140 = ssub.s32 %s23, %s34
      %s141 = sor.u32 %s139, %s140
      %p142 = scmp.eq.s32.totalorder %s141, 0
      %s144 = sadd.s32 %s143, 1
      %s145 = scalar_select %p142, %s143, %s144
      %p148 = pneg %p142
      %p149 = scmp.eq.s32.totalorder %s13, 7
      %p150 = por %p148, %p149
      %p151 = scmp.ne.s32.totalorder %s143, %s146
      %p152 = scmp.eq.s32.totalorder %s13, 0
      %p153 = por %p151, %p152
      %p154 = scmp.ne.s32.totalorder %s143, %s146
      %p155 = scmp.eq.s32.totalorder %s18, 7
      %p156 = por %p154, %p155
      %p157 = scmp.ne.s32.totalorder %s146, %s147
      %p158 = scmp.eq.s32.totalorder %s18, 0
      %p159 = por %p157, %p158
      %p160 = scmp.ne.s32.totalorder %s146, %s147
      %p161 = scmp.eq.s32.totalorder %s19, 7
      %p162 = por %p160, %p161
      %p164 = scmp.ne.s32.totalorder %s147, %s163
      %p165 = scmp.eq.s32.totalorder %s19, 0
      %p166 = por %p164, %p165
      %s167 = ssub.s32 %s20, %s46
      %s168 = ssub.s32 %s21, %s42
      %s169 = sor.u32 %s167, %s168
      %s170 = ssub.s32 %s22, %s38
      %s171 = sor.u32 %s169, %s170
      %s172 = ssub.s32 %s23, %s34
      %s173 = sor.u32 %s171, %s172
      %p174 = scmp.eq.s32.totalorder %s173, 0
      %s176 = sadd.s32 %s175, 1
      %s177 = scalar_select %p174, %s175, %s176
      %p180 = pneg %p174
      %p181 = scmp.eq.s32.totalorder %s13, 7
      %p182 = por %p180, %p181
      %p183 = scmp.ne.s32.totalorder %s175, %s178
      %p184 = scmp.eq.s32.totalorder %s13, 0
      %p185 = por %p183, %p184
      %p186 = scmp.ne.s32.totalorder %s175, %s178
      %p187 = scmp.eq.s32.totalorder %s18, 7
      %p188 = por %p186, %p187
      %p189 = scmp.ne.s32.totalorder %s178, %s179
      %p190 = scmp.eq.s32.totalorder %s18, 0
      %p191 = por %p189, %p190
      %p192 = scmp.ne.s32.totalorder %s178, %s179
      %p193 = scmp.eq.s32.totalorder %s19, 7
      %p194 = por %p192, %p193
      %p196 = scmp.ne.s32.totalorder %s179, %s195
      %p197 = scmp.eq.s32.totalorder %s19, 0
      %p198 = por %p196, %p197
      %p199 = scmp.le.s32.totalorder 1, %s13
      %p200 = scmp.lt.s32.totalorder %s13, 9
      %p201 = pnand %p199, %p200
      %p202 = pneg %p201
      // Predicated region
      $region9: #{tpu_custom_call.1} parent=5 // pred_check
        _
      $region10: #{tpu_custom_call.1} parent=5 // pred_check_branch
        %204 = sbr.rel (%p201) target = $region12
      $region11: #{tpu_custom_call.1} parent=5 // pred_region
        %s205 = ssub.s32 %s13, 1
      $region12: #{tpu_custom_call.1} parent=5 // pred_fallthru
        _
      %p206 = scmp.lt.s32.totalorder %s13, 8
      // Predicated region
      $region13: #{tpu_custom_call.1} parent=5 // pred_check
        %p207 = pneg %p206
      $region14: #{tpu_custom_call.1} parent=5 // pred_check_branch
        %209 = sbr.rel (%p207) target = $region16
      $region15: #{tpu_custom_call.1} parent=5 // pred_region
        // Predicated region
        $region17: #{tpu_custom_call.1} parent=15 // pred_check
          %p210 = pneg %p63
        $region18: #{tpu_custom_call.1} parent=15 // pred_check_branch
          %212 = sbr.rel (%p210) target = $region20
        $region19: #{tpu_custom_call.1} parent=15 // pred_region
          %s213 = smul.u32 2, %s22
          %p214 = scmp.lt.s32.totalorder %s20, 1
          %s215 = scalar_select %p214, %s20, 1
          %p216 = scmp.lt.s32.totalorder %s21, 3
          %s217 = scalar_select %p216, %s21, 3
          %p218 = scmp.lt.s32.totalorder %s213, 1
          %s219 = scalar_select %p218, %s213, 1
          %s220 = smul.addr %s217, 2
          %s221 = sadd.s32 %s219, %s220
          %s222 = smul.addr %s215, 8
          %s223 = sadd.s32 %s221, %s222
          %s224 = smul.addr %s223, 8
          %s225 = scalar_lea.vmem %s0, %s224
          %s226 = smul.u32 2, %s22
        $region20: #{tpu_custom_call.1} parent=15 // pred_fallthru
          _
        // Predicated region
        $region21: #{tpu_custom_call.1} parent=15 // pred_check
          %p227 = pneg %p93
        $region22: #{tpu_custom_call.1} parent=15 // pred_check_branch
          %229 = sbr.rel (%p227) target = $region24
        $region23: #{tpu_custom_call.1} parent=15 // pred_region
          %p230 = scmp.lt.s32.totalorder %s20, 1
          %s231 = scalar_select %p230, %s20, 1
          %p232 = scmp.lt.s32.totalorder %s21, 3
          %s233 = scalar_select %p232, %s21, 3
          %p234 = scmp.lt.s32.totalorder %s23, 0
          %s235 = scalar_select %p234, %s23, 0
          %s236 = smul.addr %s233, 4
          %s237 = sadd.s32 %s235, %s236
          %s238 = smul.addr %s231, 16
          %s239 = sadd.s32 %s237, %s238
          %s240 = smul.addr %s239, 8
          %s241 = scalar_lea.vmem %s1, %s240
        $region24: #{tpu_custom_call.1} parent=15 // pred_fallthru
          _
        // Predicated region
        $region25: #{tpu_custom_call.1} parent=15 // pred_check
          %p242 = pneg %p123
        $region26: #{tpu_custom_call.1} parent=15 // pred_check_branch
          %244 = sbr.rel (%p242) target = $region28
        $region27: #{tpu_custom_call.1} parent=15 // pred_region
          %s245 = smul.u32 2, %s22
          %p246 = scmp.lt.s32.totalorder %s20, 1
          %s247 = scalar_select %p246, %s20, 1
          %p248 = scmp.lt.s32.totalorder %s21, 3
          %s249 = scalar_select %p248, %s21, 3
          %p250 = scmp.lt.s32.totalorder %s245, 1
          %s251 = scalar_select %p250, %s245, 1
          %s252 = smul.addr %s249, 2
          %s253 = sadd.s32 %s251, %s252
          %s254 = smul.addr %s247, 8
          %s255 = sadd.s32 %s253, %s254
          %s256 = smul.addr %s255, 8
          %s257 = scalar_lea.vmem %s2, %s256
          %s258 = smul.u32 2, %s22
        $region28: #{tpu_custom_call.1} parent=15 // pred_fallthru
          _
        // Predicated region
        $region29: #{tpu_custom_call.1} parent=15 // pred_check
          %p259 = pneg %p153
        $region30: #{tpu_custom_call.1} parent=15 // pred_check_branch
          %261 = sbr.rel (%p259) target = $region32
        $region31: #{tpu_custom_call.1} parent=15 // pred_region
          %p262 = scmp.lt.s32.totalorder %s20, 1
          %s263 = scalar_select %p262, %s20, 1
          %p264 = scmp.lt.s32.totalorder %s21, 3
          %s265 = scalar_select %p264, %s21, 3
          %p266 = scmp.lt.s32.totalorder %s23, 0
          %s267 = scalar_select %p266, %s23, 0
          %s268 = sadd.s32 %s267, %s265
          %s269 = smul.addr %s263, 4
          %s270 = sadd.s32 %s268, %s269
          %s271 = scalar_lea.vmem %s3, %s270
        $region32: #{tpu_custom_call.1} parent=15 // pred_fallthru
          _
      $region16: #{tpu_custom_call.1} parent=5 // pred_fallthru
        _
      %p272 = scmp.le.s32.totalorder 1, %s13
      %p273 = scmp.lt.s32.totalorder %s13, 9
      %p274 = pnand %p272, %p273
      %p275 = pneg %p274
      // Predicated region
      $region33: #{tpu_custom_call.1} parent=5 // pred_check
        _
      $region34: #{tpu_custom_call.1} parent=5 // pred_check_branch
        %277 = sbr.rel (%p274) target = $region36
      $region35: #{tpu_custom_call.1} parent=5 // pred_region
        %s278 = ssub.s32 %s13, 1
        %s279 = smul.u32 2, %s26
        %p280 = scmp.lt.s32.totalorder %s24, 1
        %s281 = scalar_select %p280, %s24, 1
        %p282 = scmp.lt.s32.totalorder %s25, 3
        %s283 = scalar_select %p282, %s25, 3
        %p284 = scmp.lt.s32.totalorder %s279, 1
        %s285 = scalar_select %p284, %s279, 1
        %s286 = smul.addr %s283, 2
        %s287 = sadd.s32 %s285, %s286
        %s288 = smul.addr %s281, 8
        %s289 = sadd.s32 %s287, %s288
        %s290 = smul.addr %s289, 8
        %s291 = scalar_lea.vmem %s0, %s290
        %p292 = pneg %p69
        %p293 = pneg %p66
        %p294 = scmp.lt.s32.totalorder %s24, 1
        %s295 = scalar_select %p294, %s24, 1
        %p296 = scmp.lt.s32.totalorder %s25, 3
        %s297 = scalar_select %p296, %s25, 3
        %p298 = scmp.lt.s32.totalorder %s27, 0
        %s299 = scalar_select %p298, %s27, 0
        %s300 = smul.addr %s297, 4
        %s301 = sadd.s32 %s299, %s300
        %s302 = smul.addr %s295, 16
        %s303 = sadd.s32 %s301, %s302
        %s304 = smul.addr %s303, 8
        %s305 = scalar_lea.vmem %s1, %s304
        %p306 = pneg %p99
        %p307 = pneg %p96
        %s308 = smul.u32 2, %s26
        %p309 = scmp.lt.s32.totalorder %s24, 1
        %s310 = scalar_select %p309, %s24, 1
        %p311 = scmp.lt.s32.totalorder %s25, 3
        %s312 = scalar_select %p311, %s25, 3
        %p313 = scmp.lt.s32.totalorder %s308, 1
        %s314 = scalar_select %p313, %s308, 1
        %s315 = smul.addr %s312, 2
        %s316 = sadd.s32 %s314, %s315
        %s317 = smul.addr %s310, 8
        %s318 = sadd.s32 %s316, %s317
        %s319 = smul.addr %s318, 8
        %s320 = scalar_lea.vmem %s2, %s319
        %p321 = pneg %p129
        %p322 = pneg %p126
        %p323 = scmp.lt.s32.totalorder %s24, 1
        %s324 = scalar_select %p323, %s24, 1
        %p325 = scmp.lt.s32.totalorder %s25, 3
        %s326 = scalar_select %p325, %s25, 3
        %p327 = scmp.lt.s32.totalorder %s27, 0
        %s328 = scalar_select %p327, %s27, 0
        %s329 = sadd.s32 %s328, %s326
        %s330 = smul.addr %s324, 4
        %s331 = sadd.s32 %s329, %s330
        %s332 = scalar_lea.vmem %s3, %s331
        %p333 = pneg %p159
        %p334 = pneg %p156
        %p335 = pneg %p191
        %p336 = pneg %p188
        %s337 = sand.u32 %s178, 1
        %s338 = scalar_lea.sflag [#allocation3], %s337
        %s339 = sand.u32 %s178, 1
        %s340 = smul.addr %s339, 16
        %s341 = scalar_lea.vmem [#allocation2], %s340
        %s342 = smul.u32 2, %s26
        %p343 = scmp.lt.s32.totalorder %s24, 1
        %s344 = scalar_select %p343, %s24, 1
        %p345 = scmp.lt.s32.totalorder %s25, 3
        %s346 = scalar_select %p345, %s25, 3
        %p347 = scmp.lt.s32.totalorder %s342, 1
        %s348 = scalar_select %p347, %s342, 1
        %s349 = smul.addr %s346, 2
        %s350 = sadd.s32 %s348, %s349
        %s351 = smul.addr %s344, 8
        %s352 = sadd.s32 %s350, %s351
        %s353 = smul.addr %s352, 8
        %s354 = scalar_lea.vmem %s0, %s353
        %s355 = smul.u32 2, %s26
        %p356 = scmp.lt.s32.totalorder %s24, 1
        %s357 = scalar_select %p356, %s24, 1
        %p358 = scmp.lt.s32.totalorder %s25, 3
        %s359 = scalar_select %p358, %s25, 3
        %p360 = scmp.lt.s32.totalorder %s27, 0
        %s361 = scalar_select %p360, %s27, 0
        %s362 = smul.addr %s359, 4
        %s363 = sadd.s32 %s361, %s362
        %s364 = smul.addr %s357, 16
        %s365 = sadd.s32 %s363, %s364
        %s366 = smul.addr %s365, 8
        %s367 = scalar_lea.vmem %s1, %s366
        %s368 = smul.u32 2, %s26
        %p369 = scmp.lt.s32.totalorder %s24, 1
        %s370 = scalar_select %p369, %s24, 1
        %p371 = scmp.lt.s32.totalorder %s25, 3
        %s372 = scalar_select %p371, %s25, 3
        %p373 = scmp.lt.s32.totalorder %s368, 1
        %s374 = scalar_select %p373, %s368, 1
        %s375 = smul.addr %s372, 2
        %s376 = sadd.s32 %s374, %s375
        %s377 = smul.addr %s370, 8
        %s378 = sadd.s32 %s376, %s377
        %s379 = smul.addr %s378, 8
        %s380 = scalar_lea.vmem %s2, %s379
        %s381 = smul.u32 2, %s26
        %p382 = scmp.lt.s32.totalorder %s24, 1
        %s383 = scalar_select %p382, %s24, 1
        %p384 = scmp.lt.s32.totalorder %s25, 3
        %s385 = scalar_select %p384, %s25, 3
        %p386 = scmp.lt.s32.totalorder %s27, 0
        %s387 = scalar_select %p386, %s27, 0
        %s388 = sadd.s32 %s387, %s385
        %s389 = smul.addr %s383, 4
        %s390 = sadd.s32 %s388, %s389
        %s391 = scalar_lea.vmem %s3, %s390
        %s392 = smul.u32 2, %s26
        %v393 = vld [vmem:[%s354] sm:$0xff]
        %v394 = vld [vmem:[%s354 + $0x8] sm:$0xff]
        %v395 = vld [vmem:[%s367] sm:$0xff]
        %v396 = vld [vmem:[%s367 + $0x8] sm:$0xff]
        %v397 = vld [vmem:[%s367 + $0x10] sm:$0xff]
        %v398 = vld [vmem:[%s367 + $0x18] sm:$0xff]
        %v399 = vmul.f32 %v393, -2.0
        %v400 = vmul.f32 %v394, -2.0
        %vm401 = vcmask 261120
        %v403 = vsel %vm401, %v399, 0
        %v406 = vsel %vm401, %v400, 0
        %408 = vmatpush.msra.mxu0 0.0
        %409 = vmatpush.msra.mxu0 0.0
        %410 = vmatpush.msra.mxu0 0.0
        %411 = vmatpush.msra.mxu0 0.0
        %412 = vmatpush.msra.mxu0 0.0
        %413 = vmatpush.msra.mxu0 0.0
        %414 = vmatpush.msra.mxu0 0.0
        %415 = vmatpush.msra.mxu0 0.0
        %416 = vmatpush.msra.mxu0 0.0
        %417 = vmatpush.msra.mxu0 0.0
        %418 = vmatpush.msra.mxu0 0.0
        %419 = vmatpush.msra.mxu0 0.0
        %v420 = vand.u32 %v398, 4294901760
        %421 = vmatpush.msra.mxu0 %v420
        %v422 = vand.u32 %v397, 4294901760
        %423 = vmatpush.msra.mxu0 %v422
        %v424 = vand.u32 %v396, 4294901760
        %425 = vmatpush.msra.mxu0 %v424
        %v426 = vand.u32 %v395, 4294901760
        %427 = vmatpush.msra.mxu0 %v426
        %v428 = vand.u32 %v403, 4294901760
        %v429 = vsub.f32 %v403, %v428
        %v430 = vand.u32 %v429, 4294901760
        %v431 = vsub.f32 %v429, %v430
        %v432 = vand.u32 %v431, 4294901760
        %433 = vmatmul.f32.gmra.mxu0 %v432
        %v434 = vpop.f32.mrf.mxu0
        %v435 = vadd.f32 0.0, %v434
        %v436 = vand.u32 %v406, 4294901760
        %v437 = vsub.f32 %v406, %v436
        %v438 = vand.u32 %v437, 4294901760
        %v439 = vsub.f32 %v437, %v438
        %v440 = vand.u32 %v439, 4294901760
        %441 = vmatmul.f32.gmra.mxu0 %v440
        %v442 = vpop.f32.mrf.mxu0
        %v443 = vadd.f32 0.0, %v442
        %444 = vdwg.mxu0
        %445 = vmatpush.msra.mxu0 0.0
        %446 = vmatpush.msra.mxu0 0.0
        %447 = vmatpush.msra.mxu0 0.0
        %448 = vmatpush.msra.mxu0 0.0
        %449 = vmatpush.msra.mxu0 0.0
        %450 = vmatpush.msra.mxu0 0.0
        %451 = vmatpush.msra.mxu0 0.0
        %452 = vmatpush.msra.mxu0 0.0
        %453 = vmatpush.msra.mxu0 0.0
        %454 = vmatpush.msra.mxu0 0.0
        %455 = vmatpush.msra.mxu0 0.0
        %456 = vmatpush.msra.mxu0 0.0
        %v457 = vand.u32 %v398, 4294901760
        %v458 = vsub.f32 %v398, %v457
        %v459 = vand.u32 %v458, 4294901760
        %v460 = vsub.f32 %v458, %v459
        %v461 = vand.u32 %v460, 4294901760
        %462 = vmatpush.msra.mxu0 %v461
        %v463 = vand.u32 %v397, 4294901760
        %v464 = vsub.f32 %v397, %v463
        %v465 = vand.u32 %v464, 4294901760
        %v466 = vsub.f32 %v464, %v465
        %v467 = vand.u32 %v466, 4294901760
        %468 = vmatpush.msra.mxu0 %v467
        %v469 = vand.u32 %v396, 4294901760
        %v470 = vsub.f32 %v396, %v469
        %v471 = vand.u32 %v470, 4294901760
        %v472 = vsub.f32 %v470, %v471
        %v473 = vand.u32 %v472, 4294901760
        %474 = vmatpush.msra.mxu0 %v473
        %v475 = vand.u32 %v395, 4294901760
        %v476 = vsub.f32 %v395, %v475
        %v477 = vand.u32 %v476, 4294901760
        %v478 = vsub.f32 %v476, %v477
        %v479 = vand.u32 %v478, 4294901760
        %480 = vmatpush.msra.mxu0 %v479
        %v481 = vand.u32 %v403, 4294901760
        %482 = vmatmul.f32.gmra.mxu0 %v481
        %v483 = vpop.f32.mrf.mxu0
        %v484 = vadd.f32 %v435, %v483
        %v485 = vand.u32 %v406, 4294901760
        %486 = vmatmul.f32.gmra.mxu0 %v485
        %v487 = vpop.f32.mrf.mxu0
        %v488 = vadd.f32 %v443, %v487
        %489 = vdwg.mxu0
        %490 = vmatpush.msra.mxu0 0.0
        %491 = vmatpush.msra.mxu0 0.0
        %492 = vmatpush.msra.mxu0 0.0
        %493 = vmatpush.msra.mxu0 0.0
        %494 = vmatpush.msra.mxu0 0.0
        %495 = vmatpush.msra.mxu0 0.0
        %496 = vmatpush.msra.mxu0 0.0
        %497 = vmatpush.msra.mxu0 0.0
        %498 = vmatpush.msra.mxu0 0.0
        %499 = vmatpush.msra.mxu0 0.0
        %500 = vmatpush.msra.mxu0 0.0
        %501 = vmatpush.msra.mxu0 0.0
        %v502 = vand.u32 %v398, 4294901760
        %v503 = vsub.f32 %v398, %v502
        %504 = vmatpush.msra.mxu0 %v503
        %v505 = vand.u32 %v397, 4294901760
        %v506 = vsub.f32 %v397, %v505
        %507 = vmatpush.msra.mxu0 %v506
        %v508 = vand.u32 %v396, 4294901760
        %v509 = vsub.f32 %v396, %v508
        %510 = vmatpush.msra.mxu0 %v509
        %v511 = vand.u32 %v395, 4294901760
        %v512 = vsub.f32 %v395, %v511
        %513 = vmatpush.msra.mxu0 %v512
        %v514 = vand.u32 %v403, 4294901760
        %v515 = vsub.f32 %v403, %v514
        %516 = vmatmul.f32.gmra.mxu0 %v515
        %v517 = vpop.f32.mrf.mxu0
        %v518 = vadd.f32 %v484, %v517
        %v519 = vand.u32 %v406, 4294901760
        %v520 = vsub.f32 %v406, %v519
        %521 = vmatmul.f32.gmra.mxu0 %v520
        %v522 = vpop.f32.mrf.mxu0
        %v523 = vadd.f32 %v488, %v522
        %524 = vdwg.mxu0
        %525 = vmatpush.msra.mxu0 0.0
        %526 = vmatpush.msra.mxu0 0.0
        %527 = vmatpush.msra.mxu0 0.0
        %528 = vmatpush.msra.mxu0 0.0
        %529 = vmatpush.msra.mxu0 0.0
        %530 = vmatpush.msra.mxu0 0.0
        %531 = vmatpush.msra.mxu0 0.0
        %532 = vmatpush.msra.mxu0 0.0
        %533 = vmatpush.msra.mxu0 0.0
        %534 = vmatpush.msra.mxu0 0.0
        %535 = vmatpush.msra.mxu0 0.0
        %536 = vmatpush.msra.mxu0 0.0
        %v537 = vand.u32 %v398, 4294901760
        %538 = vmatpush.msra.mxu0 %v537
        %v539 = vand.u32 %v397, 4294901760
        %540 = vmatpush.msra.mxu0 %v539
        %v541 = vand.u32 %v396, 4294901760
        %542 = vmatpush.msra.mxu0 %v541
        %v543 = vand.u32 %v395, 4294901760
        %544 = vmatpush.msra.mxu0 %v543
        %v545 = vand.u32 %v403, 4294901760
        %v546 = vsub.f32 %v403, %v545
        %v547 = vand.u32 %v546, 4294901760
        %548 = vmatmul.f32.gmra.mxu0 %v547
        %v549 = vpop.f32.mrf.mxu0
        %v550 = vadd.f32 %v518, %v549
        %v551 = vand.u32 %v406, 4294901760
        %v552 = vsub.f32 %v406, %v551
        %v553 = vand.u32 %v552, 4294901760
        %554 = vmatmul.f32.gmra.mxu0 %v553
        %v555 = vpop.f32.mrf.mxu0
        %v556 = vadd.f32 %v523, %v555
        %557 = vdwg.mxu0
        %558 = vmatpush.msra.mxu0 0.0
        %559 = vmatpush.msra.mxu0 0.0
        %560 = vmatpush.msra.mxu0 0.0
        %561 = vmatpush.msra.mxu0 0.0
        %562 = vmatpush.msra.mxu0 0.0
        %563 = vmatpush.msra.mxu0 0.0
        %564 = vmatpush.msra.mxu0 0.0
        %565 = vmatpush.msra.mxu0 0.0
        %566 = vmatpush.msra.mxu0 0.0
        %567 = vmatpush.msra.mxu0 0.0
        %568 = vmatpush.msra.mxu0 0.0
        %569 = vmatpush.msra.mxu0 0.0
        %v570 = vand.u32 %v398, 4294901760
        %v571 = vsub.f32 %v398, %v570
        %v572 = vand.u32 %v571, 4294901760
        %573 = vmatpush.msra.mxu0 %v572
        %v574 = vand.u32 %v397, 4294901760
        %v575 = vsub.f32 %v397, %v574
        %v576 = vand.u32 %v575, 4294901760
        %577 = vmatpush.msra.mxu0 %v576
        %v578 = vand.u32 %v396, 4294901760
        %v579 = vsub.f32 %v396, %v578
        %v580 = vand.u32 %v579, 4294901760
        %581 = vmatpush.msra.mxu0 %v580
        %v582 = vand.u32 %v395, 4294901760
        %v583 = vsub.f32 %v395, %v582
        %v584 = vand.u32 %v583, 4294901760
        %585 = vmatpush.msra.mxu0 %v584
        %v586 = vand.u32 %v403, 4294901760
        %587 = vmatmul.f32.gmra.mxu0 %v586
        %v588 = vpop.f32.mrf.mxu0
        %v589 = vadd.f32 %v550, %v588
        %v590 = vand.u32 %v406, 4294901760
        %591 = vmatmul.f32.gmra.mxu0 %v590
        %v592 = vpop.f32.mrf.mxu0
        %v593 = vadd.f32 %v556, %v592
        %594 = vdwg.mxu0
        %595 = vmatpush.msra.mxu0 0.0
        %596 = vmatpush.msra.mxu0 0.0
        %597 = vmatpush.msra.mxu0 0.0
        %598 = vmatpush.msra.mxu0 0.0
        %599 = vmatpush.msra.mxu0 0.0
        %600 = vmatpush.msra.mxu0 0.0
        %601 = vmatpush.msra.mxu0 0.0
        %602 = vmatpush.msra.mxu0 0.0
        %603 = vmatpush.msra.mxu0 0.0
        %604 = vmatpush.msra.mxu0 0.0
        %605 = vmatpush.msra.mxu0 0.0
        %606 = vmatpush.msra.mxu0 0.0
        %v607 = vand.u32 %v398, 4294901760
        %608 = vmatpush.msra.mxu0 %v607
        %v609 = vand.u32 %v397, 4294901760
        %610 = vmatpush.msra.mxu0 %v609
        %v611 = vand.u32 %v396, 4294901760
        %612 = vmatpush.msra.mxu0 %v611
        %v613 = vand.u32 %v395, 4294901760
        %614 = vmatpush.msra.mxu0 %v613
        %v615 = vand.u32 %v403, 4294901760
        %616 = vmatmul.f32.gmra.mxu0 %v615
        %v617 = vpop.f32.mrf.mxu0
        %v618 = vadd.f32 %v589, %v617
        %v619 = vand.u32 %v406, 4294901760
        %620 = vmatmul.f32.gmra.mxu0 %v619
        %v621 = vpop.f32.mrf.mxu0
        %v622 = vadd.f32 %v593, %v621
        %623 = vdwg.mxu0
        %v624 = vld [vmem:[%s380] sm:$0xff]
        %v625 = vld [vmem:[%s380 + $0x8] sm:$0xff]
        %v626 = vld [vmem:[%s391] sm:$0x1]
        %628 = vset.pattern.permute.xlu0 0
        %629 = vperm.xlu0 %628, %v624
        %v630 = vpop.permute.xlu0 %629
        %633 = vset.pattern.permute.xlu0 0
        %634 = vperm.xlu0 %633, %v625
        %v635 = vpop.permute.xlu0 %634
        %v638 = vperm.slane %v626, 0
        %v640 = vadd.f32 %v630, %v638
        %v641 = vadd.f32 %v635, %v638
        %v642 = vadd.f32 %v640, %v618
        %v643 = vadd.f32 %v641, %v622
        %v644 = vmax.f32 %v642, 0.0
        %v645 = vmax.f32 %v643, 0.0
        %vm646 = vcmask 130048
        %647 = vst.msk [vmem:[%s341] sm:$0xff] %vm646, %v644
        %648 = vst.msk [vmem:[%s341 + $0x8] sm:$0xff] %vm646, %v645
        %s649 = sand.u32 %s178, 1
        %s650 = scalar_lea.sflag [#allocation3], %s649
        %s651 = sand.u32 %s178, 1
        %s652 = smul.addr %s651, 16
        %s653 = scalar_lea.vmem [#allocation2], %s652
        // Predicated region
        $region37: #{tpu_custom_call.1} parent=35 // pred_check
          %p654 = pneg %p188
        $region38: #{tpu_custom_call.1} parent=35 // pred_check_branch
          %656 = sbr.rel (%p654) target = $region40
        $region39: #{tpu_custom_call.1} parent=35 // pred_region
          %s657 = smul.u32 2, %s26
          %659 = vsyncadd %s650, 0
          %s660 = sadd.s32 %s27, %s657
          %s661 = smul.addr %s25, 2
          %s662 = sadd.s32 %s660, %s661
          %s663 = smul.addr %s24, 8
          %s664 = sadd.s32 %s662, %s663
          %s665 = smul.addr %s664, 8
          %s666 = scalar_lea.hbm %s4, %s665
          %s667 = sshll.u32 %s653, 4
          %s668 = int_to_ptr.vmem [resolvable:$true] %s667
          %s669 = sshll.u32 %s666, 4
          %s670 = int_to_ptr.hbm [resolvable:$true] %s669
          %675 = dma.vmem_to_hbm [thread:$0]  %s668, 256, %s670, %s650, 128, 128, 8
        $region40: #{tpu_custom_call.1} parent=35 // pred_fallthru
          _
      $region36: #{tpu_custom_call.1} parent=5 // pred_fallthru
        _
      %p676 = scmp.le.s32.totalorder 2, %s13
      // Predicated region
      $region41: #{tpu_custom_call.1} parent=5 // pred_check
        %p677 = pneg %p676
      $region42: #{tpu_custom_call.1} parent=5 // pred_check_branch
        %679 = sbr.rel (%p677) target = $region44
      $region43: #{tpu_custom_call.1} parent=5 // pred_region
        %s680 = ssub.s32 %s13, 2
        // Predicated region
        $region45: #{tpu_custom_call.1} parent=43 // pred_check
          %p681 = pneg %p194
        $region46: #{tpu_custom_call.1} parent=43 // pred_check_branch
          %683 = sbr.rel (%p681) target = $region48
        $region47: #{tpu_custom_call.1} parent=43 // pred_region
          %s684 = sand.u32 %s179, 1
          %s685 = scalar_lea.sflag [#allocation3], %s684
          %s686 = sand.u32 %s179, 1
          %s687 = smul.addr %s686, 16
          %s688 = scalar_lea.vmem [#allocation2], %s687
          %690 = dma.done %s685, 256
        $region48: #{tpu_custom_call.1} parent=43 // pred_fallthru
          _
      $region44: #{tpu_custom_call.1} parent=5 // pred_fallthru
        _
    $region6: #{tpu_custom_call.1} parent=1 // loop_footer
      %s17 = sadd.s32 1, %s13
    $region7: #{tpu_custom_call.1} parent=1 // loop_footer_branch
      %12 = sbr.rel target = $region3
    $region8: #{tpu_custom_call.1} parent=1 // loop_exit
      _
    %691 = vsyncpa [#allocation3], 1
    %s692 = scalar_lea.sflag [#allocation3], 1
    %693 = vsyncpa %s692, 1

</llo_original>
